<compile_context>
chip_gen: v6e
topology: v6e:2x2x1
jax: 0.10.0
libtpu: 0.0.40
codegen_flags: <defaults>
</compile_context>

<pallas_src>
import functools

import jax
import jax.numpy as jnp
import numpy as np
from jax.experimental import pallas as pl
from jax.experimental.pallas import tpu as pltpu

# Synthetic module hyper-parameters (small)
NB_DICO = 4            # channels (nb_dico)
SIZE_IMAGE = (16, 16)  # (H, W)
NB_CATEGORIES = 10
BN_EPS = 1e-5


def classif_kernel(scal_ref, x_ref, wt_ref, o_ref,
                   *, n_valid, n_chan, hw, n_cls):
    """Fused BatchNorm2d (batch stats) + Linear + softmax.

    scal_ref: (2C+K,) f32 SMEM  -- [gamma(C) | beta(C) | fc1.bias(K)]
    x_ref   : (Bp, D) f32 VMEM  -- D = C*H*W, channel-major flattening; rows
                                   beyond n_valid are zero padding.
    wt_ref  : (D, Kp) bf16 VMEM -- fc1.weight^T, zero-padded to Kp lanes.
    o_ref   : (Bp, Kp) f32 VMEM -- softmax probabilities; valid block [:B,:K].
    """
    x = x_ref[...]                                   # f32 (Bp, D)
    bp, d_tot = x.shape
    kp = o_ref.shape[1]
    inv_n = 1.0 / float(n_valid * hw)                # true-count divisor

    # Row-validity mask: padded rows are zero (no effect on sums) but must be
    # excluded from the centered second moment.
    row_valid = jax.lax.broadcasted_iota(jnp.int32, (bp, hw), 0) < n_valid

    # Per-channel BN batch statistics -> full-width affine (scale, shift) rows.
    lane = jax.lax.broadcasted_iota(jnp.int32, (1, d_tot), 1)
    scale_row = jnp.zeros((1, d_tot), jnp.float32)
    shift_row = jnp.zeros((1, d_tot), jnp.float32)
    for c in range(n_chan):
        xc = x[:, c * hw:(c + 1) * hw]               # (Bp, HW)
        mu = jnp.sum(xc) * inv_n                     # pad rows contribute 0
        diff = jnp.where(row_valid, xc - mu, 0.0)    # two-pass variance
        var = jnp.sum(diff * diff) * inv_n           # biased (train-mode BN)
        scale = scal_ref[c] * jax.lax.rsqrt(var + BN_EPS)
        shift = scal_ref[n_chan + c] - mu * scale
        in_c = (lane >= c * hw) & (lane < (c + 1) * hw)
        scale_row = jnp.where(in_c, scale, scale_row)
        shift_row = jnp.where(in_c, shift, shift_row)

    # Single fused normalize + ONE MXU matmul (f32 accumulation).
    xn = (x * scale_row + shift_row).astype(jnp.bfloat16)
    acc = jnp.dot(xn, wt_ref[...], preferred_element_type=jnp.float32)

    # Bias from SMEM scalars; padded logit columns masked to -inf in-kernel
    # (robust, no -1e30 sentinel / zero-weight-column dependency).
    col = jax.lax.broadcasted_iota(jnp.int32, (1, kp), 1)
    brow = jnp.zeros((1, kp), jnp.float32)
    for k in range(n_cls):
        brow = jnp.where(col == k, scal_ref[2 * n_chan + k], brow)
    logits = jnp.where(col < n_cls, acc + brow, -jnp.inf)

    # softmax along dim=1 (masked columns -> exactly 0 probability)
    m = jnp.max(logits, axis=1, keepdims=True)
    e = jnp.exp(logits - m)
    o_ref[...] = e / jnp.sum(e, axis=1, keepdims=True)


def prepare_params(gamma, beta, w, b):
    """One-time parameter prep (hoisted out of the forward path)."""
    K, D = w.shape
    Kp = max(128, ((K + 127) // 128) * 128)          # lane-dense output / MXU N
    wt = jnp.zeros((D, Kp), jnp.bfloat16).at[:, :K].set(w.T.astype(jnp.bfloat16))
    scalars = jnp.concatenate([gamma.astype(jnp.float32),
                               beta.astype(jnp.float32),
                               b.astype(jnp.float32)])
    return scalars, wt


@functools.partial(jax.jit, static_argnames=("n_chan", "hw", "n_cls"))
def classif_layer_forward(x_nchw, scalars, wt, *, n_chan, hw, n_cls):
    """Per-call wrapper: flatten/pad x (glue only) and invoke the fused kernel."""
    B = x_nchw.shape[0]
    D = n_chan * hw
    Kp = wt.shape[1]
    Bp = max(16, ((B + 15) // 16) * 16)              # 16 sublanes: packed bf16 operand

    # Same memory order as torch .view(-1, C*H*W); zero-pad extra rows.
    x_flat = x_nchw.reshape(B, D).astype(jnp.float32)
    x_pad = jnp.zeros((Bp, D), jnp.float32).at[:B, :].set(x_flat)

    kernel = functools.partial(classif_kernel, n_valid=B, n_chan=n_chan,
                               hw=hw, n_cls=n_cls)

    out = pl.pallas_call(
        kernel,
        out_shape=jax.ShapeDtypeStruct((Bp, Kp), jnp.float32),
        in_specs=[
            pl.BlockSpec(memory_space=pltpu.MemorySpace.SMEM),   # gamma|beta|bias
            pl.BlockSpec(memory_space=pltpu.MemorySpace.VMEM),   # x (padded)
            pl.BlockSpec(memory_space=pltpu.MemorySpace.VMEM),   # W^T (padded bf16)
        ],
        out_specs=pl.BlockSpec(memory_space=pltpu.MemorySpace.VMEM),
        cost_estimate=pl.CostEstimate(
            flops=2 * Bp * D * Kp,
            transcendentals=Bp * Kp,
            bytes_accessed=Bp * D * 4 + D * Kp * 2 + Bp * Kp * 4),
    )(scalars, x_pad, wt)

    return out[:B, :n_cls]


def reference_forward(x, gamma, beta, w, b):
    """Pure-JAX reference mirroring the PyTorch module in train-mode BN."""
    mu = x.mean(axis=(0, 2, 3), keepdims=True)
    var = ((x - mu) ** 2).mean(axis=(0, 2, 3), keepdims=True)
    xn = (x - mu) / jnp.sqrt(var + BN_EPS)
    xn = xn * gamma.reshape(1, -1, 1, 1) + beta.reshape(1, -1, 1, 1)
    flat = xn.reshape(x.shape[0], -1)
    logits = flat @ w.T + b
    return jax.nn.softmax(logits, axis=1)


if __name__ == "__main__":
    key = jax.random.PRNGKey(0)
    k_x, k_g, k_b, k_w, k_fb = jax.random.split(key, 5)

    B = 2
    C = NB_DICO
    H, W = SIZE_IMAGE
    D = C * H * W
    K = NB_CATEGORIES

    # Deterministic synthetic parameters (shapes from Classif_Layer.__init__).
    x = jax.random.normal(k_x, (B, C, H, W), dtype=jnp.float32)
    gamma = 1.0 + 0.1 * jax.random.normal(k_g, (C,), dtype=jnp.float32)   # BN weight
    beta = 0.1 * jax.random.normal(k_b, (C,), dtype=jnp.float32)          # BN bias
    bound = 1.0 / np.sqrt(D)                                              # nn.Linear default init
    fc1_w = jax.random.uniform(k_w, (K, D), minval=-bound, maxval=bound, dtype=jnp.float32)
    fc1_b = jax.random.uniform(k_fb, (K,), minval=-bound, maxval=bound, dtype=jnp.float32)

    # One-time parameter prep (not on the per-forward path).
    scalars, wt = prepare_params(gamma, beta, fc1_w, fc1_b)
    scalars, wt = jax.block_until_ready((scalars, wt))

    out = classif_layer_forward(x, scalars, wt, n_chan=C, hw=H * W, n_cls=K)
    out = jax.block_until_ready(out)

    ref = reference_forward(x, gamma, beta, fc1_w, fc1_b)
    # Tolerances limited only by bf16 MXU operands (f32 BN/softmax, exact divide).
    np.testing.assert_allclose(np.asarray(out), np.asarray(ref), rtol=2e-2, atol=2e-3)
    assert out.shape == (B, K)
    np.testing.assert_allclose(np.asarray(out).sum(axis=1), np.ones(B), atol=1e-5)

    print("KERNEL_OK")
</pallas_src>

<mosaic_0001>
module attributes {stable_mosaic.version = 11 : i64} {
  func.func @classif_kernel(%arg0: memref<18xf32, #tpu.memory_space<smem>>, %arg1: memref<16x1024xf32, #tpu.memory_space<vmem>>, %arg2: memref<1024x128xbf16, #tpu.memory_space<vmem>>, %arg3: memref<16x128xf32, #tpu.memory_space<vmem>>) attributes {dimension_semantics = [], scalar_prefetch = 0 : i64, scratch_operands = 0 : i64, tpu.core_type = #tpu.core_type<tc>} {
    %c0 = arith.constant 0 : index
    %c0_0 = arith.constant 0 : index
    %0 = vector.load %arg1[%c0, %c0_0] : memref<16x1024xf32, #tpu.memory_space<vmem>>, vector<16x1024xf32>
    %1 = tpu.iota {dimensions = array<i32: 0>} : vector<16x256xi32>
    %c2_i32 = arith.constant 2 : i32
    %2 = vector.broadcast %c2_i32 : i32 to vector<16x256xi32>
    %3 = arith.cmpi slt, %1, %2 : vector<16x256xi32>
    %4 = tpu.iota {dimensions = array<i32: 1>} : vector<1x1024xi32>
    %cst = arith.constant 0.000000e+00 : f32
    %5 = vector.broadcast %cst : f32 to vector<1x1024xf32>
    %cst_1 = arith.constant 0.000000e+00 : f32
    %6 = vector.broadcast %cst_1 : f32 to vector<1x1024xf32>
    %7 = vector.extract_strided_slice %0 {offsets = [0, 0], sizes = [16, 256], strides = [1, 1]} : vector<16x1024xf32> to vector<16x256xf32>
    %8 = vector.shape_cast %7 : vector<16x256xf32> to vector<1x16x256xf32>
    %cst_2 = arith.constant dense<0.000000e+00> : vector<1xf32>
    %9 = vector.multi_reduction <add>, %8, %cst_2 [1, 2] : vector<1x16x256xf32> to vector<1xf32>
    %10 = vector.shape_cast %9 : vector<1xf32> to vector<1x1x1xf32>
    %11 = vector.extract %10[0, 0, 0] : f32 from vector<1x1x1xf32>
    %cst_3 = arith.constant 0.001953125 : f32
    %12 = arith.mulf %11, %cst_3 : f32
    %13 = vector.broadcast %12 : f32 to vector<16x256xf32>
    %14 = arith.subf %7, %13 : vector<16x256xf32>
    %cst_4 = arith.constant 0.000000e+00 : f32
    %15 = vector.broadcast %cst_4 : f32 to vector<16x256xf32>
    %16 = arith.select %3, %14, %15 : vector<16x256xi1>, vector<16x256xf32>
    %17 = arith.mulf %16, %16 : vector<16x256xf32>
    %18 = vector.shape_cast %17 : vector<16x256xf32> to vector<1x16x256xf32>
    %cst_5 = arith.constant dense<0.000000e+00> : vector<1xf32>
    %19 = vector.multi_reduction <add>, %18, %cst_5 [1, 2] : vector<1x16x256xf32> to vector<1xf32>
    %20 = vector.shape_cast %19 : vector<1xf32> to vector<1x1x1xf32>
    %21 = vector.extract %20[0, 0, 0] : f32 from vector<1x1x1xf32>
    %cst_6 = arith.constant 0.001953125 : f32
    %22 = arith.mulf %21, %cst_6 : f32
    %c0_7 = arith.constant 0 : index
    %23 = memref.load %arg0[%c0_7] : memref<18xf32, #tpu.memory_space<smem>>
    %cst_8 = arith.constant 9.99999974E-6 : f32
    %24 = arith.addf %22, %cst_8 : f32
    %25 = math.rsqrt %24 : f32
    %26 = arith.mulf %23, %25 : f32
    %c4 = arith.constant 4 : index
    %27 = memref.load %arg0[%c4] : memref<18xf32, #tpu.memory_space<smem>>
    %28 = arith.mulf %12, %26 : f32
    %29 = arith.subf %27, %28 : f32
    %c0_i32 = arith.constant 0 : i32
    %30 = vector.broadcast %c0_i32 : i32 to vector<1x1024xi32>
    %31 = arith.cmpi sge, %4, %30 : vector<1x1024xi32>
    %c256_i32 = arith.constant 256 : i32
    %32 = vector.broadcast %c256_i32 : i32 to vector<1x1024xi32>
    %33 = arith.cmpi slt, %4, %32 : vector<1x1024xi32>
    %34 = arith.andi %31, %33 : vector<1x1024xi1>
    %35 = vector.broadcast %26 : f32 to vector<1x1024xf32>
    %36 = arith.select %34, %35, %5 : vector<1x1024xi1>, vector<1x1024xf32>
    %37 = vector.broadcast %29 : f32 to vector<1x1024xf32>
    %38 = arith.select %34, %37, %6 : vector<1x1024xi1>, vector<1x1024xf32>
    %39 = vector.extract_strided_slice %0 {offsets = [0, 256], sizes = [16, 256], strides = [1, 1]} : vector<16x1024xf32> to vector<16x256xf32>
    %40 = vector.shape_cast %39 : vector<16x256xf32> to vector<1x16x256xf32>
    %cst_9 = arith.constant dense<0.000000e+00> : vector<1xf32>
    %41 = vector.multi_reduction <add>, %40, %cst_9 [1, 2] : vector<1x16x256xf32> to vector<1xf32>
    %42 = vector.shape_cast %41 : vector<1xf32> to vector<1x1x1xf32>
    %43 = vector.extract %42[0, 0, 0] : f32 from vector<1x1x1xf32>
    %cst_10 = arith.constant 0.001953125 : f32
    %44 = arith.mulf %43, %cst_10 : f32
    %45 = vector.broadcast %44 : f32 to vector<16x256xf32>
    %46 = arith.subf %39, %45 : vector<16x256xf32>
    %cst_11 = arith.constant 0.000000e+00 : f32
    %47 = vector.broadcast %cst_11 : f32 to vector<16x256xf32>
    %48 = arith.select %3, %46, %47 : vector<16x256xi1>, vector<16x256xf32>
    %49 = arith.mulf %48, %48 : vector<16x256xf32>
    %50 = vector.shape_cast %49 : vector<16x256xf32> to vector<1x16x256xf32>
    %cst_12 = arith.constant dense<0.000000e+00> : vector<1xf32>
    %51 = vector.multi_reduction <add>, %50, %cst_12 [1, 2] : vector<1x16x256xf32> to vector<1xf32>
    %52 = vector.shape_cast %51 : vector<1xf32> to vector<1x1x1xf32>
    %53 = vector.extract %52[0, 0, 0] : f32 from vector<1x1x1xf32>
    %cst_13 = arith.constant 0.001953125 : f32
    %54 = arith.mulf %53, %cst_13 : f32
    %c1 = arith.constant 1 : index
    %55 = memref.load %arg0[%c1] : memref<18xf32, #tpu.memory_space<smem>>
    %cst_14 = arith.constant 9.99999974E-6 : f32
    %56 = arith.addf %54, %cst_14 : f32
    %57 = math.rsqrt %56 : f32
    %58 = arith.mulf %55, %57 : f32
    %c5 = arith.constant 5 : index
    %59 = memref.load %arg0[%c5] : memref<18xf32, #tpu.memory_space<smem>>
    %60 = arith.mulf %44, %58 : f32
    %61 = arith.subf %59, %60 : f32
    %c256_i32_15 = arith.constant 256 : i32
    %62 = vector.broadcast %c256_i32_15 : i32 to vector<1x1024xi32>
    %63 = arith.cmpi sge, %4, %62 : vector<1x1024xi32>
    %c512_i32 = arith.constant 512 : i32
    %64 = vector.broadcast %c512_i32 : i32 to vector<1x1024xi32>
    %65 = arith.cmpi slt, %4, %64 : vector<1x1024xi32>
    %66 = arith.andi %63, %65 : vector<1x1024xi1>
    %67 = vector.broadcast %58 : f32 to vector<1x1024xf32>
    %68 = arith.select %66, %67, %36 : vector<1x1024xi1>, vector<1x1024xf32>
    %69 = vector.broadcast %61 : f32 to vector<1x1024xf32>
    %70 = arith.select %66, %69, %38 : vector<1x1024xi1>, vector<1x1024xf32>
    %71 = vector.extract_strided_slice %0 {offsets = [0, 512], sizes = [16, 256], strides = [1, 1]} : vector<16x1024xf32> to vector<16x256xf32>
    %72 = vector.shape_cast %71 : vector<16x256xf32> to vector<1x16x256xf32>
    %cst_16 = arith.constant dense<0.000000e+00> : vector<1xf32>
    %73 = vector.multi_reduction <add>, %72, %cst_16 [1, 2] : vector<1x16x256xf32> to vector<1xf32>
    %74 = vector.shape_cast %73 : vector<1xf32> to vector<1x1x1xf32>
    %75 = vector.extract %74[0, 0, 0] : f32 from vector<1x1x1xf32>
    %cst_17 = arith.constant 0.001953125 : f32
    %76 = arith.mulf %75, %cst_17 : f32
    %77 = vector.broadcast %76 : f32 to vector<16x256xf32>
    %78 = arith.subf %71, %77 : vector<16x256xf32>
    %cst_18 = arith.constant 0.000000e+00 : f32
    %79 = vector.broadcast %cst_18 : f32 to vector<16x256xf32>
    %80 = arith.select %3, %78, %79 : vector<16x256xi1>, vector<16x256xf32>
    %81 = arith.mulf %80, %80 : vector<16x256xf32>
    %82 = vector.shape_cast %81 : vector<16x256xf32> to vector<1x16x256xf32>
    %cst_19 = arith.constant dense<0.000000e+00> : vector<1xf32>
    %83 = vector.multi_reduction <add>, %82, %cst_19 [1, 2] : vector<1x16x256xf32> to vector<1xf32>
    %84 = vector.shape_cast %83 : vector<1xf32> to vector<1x1x1xf32>
    %85 = vector.extract %84[0, 0, 0] : f32 from vector<1x1x1xf32>
    %cst_20 = arith.constant 0.001953125 : f32
    %86 = arith.mulf %85, %cst_20 : f32
    %c2 = arith.constant 2 : index
    %87 = memref.load %arg0[%c2] : memref<18xf32, #tpu.memory_space<smem>>
    %cst_21 = arith.constant 9.99999974E-6 : f32
    %88 = arith.addf %86, %cst_21 : f32
    %89 = math.rsqrt %88 : f32
    %90 = arith.mulf %87, %89 : f32
    %c6 = arith.constant 6 : index
    %91 = memref.load %arg0[%c6] : memref<18xf32, #tpu.memory_space<smem>>
    %92 = arith.mulf %76, %90 : f32
    %93 = arith.subf %91, %92 : f32
    %c512_i32_22 = arith.constant 512 : i32
    %94 = vector.broadcast %c512_i32_22 : i32 to vector<1x1024xi32>
    %95 = arith.cmpi sge, %4, %94 : vector<1x1024xi32>
    %c768_i32 = arith.constant 768 : i32
    %96 = vector.broadcast %c768_i32 : i32 to vector<1x1024xi32>
    %97 = arith.cmpi slt, %4, %96 : vector<1x1024xi32>
    %98 = arith.andi %95, %97 : vector<1x1024xi1>
    %99 = vector.broadcast %90 : f32 to vector<1x1024xf32>
    %100 = arith.select %98, %99, %68 : vector<1x1024xi1>, vector<1x1024xf32>
    %101 = vector.broadcast %93 : f32 to vector<1x1024xf32>
    %102 = arith.select %98, %101, %70 : vector<1x1024xi1>, vector<1x1024xf32>
    %103 = vector.extract_strided_slice %0 {offsets = [0, 768], sizes = [16, 256], strides = [1, 1]} : vector<16x1024xf32> to vector<16x256xf32>
    %104 = vector.shape_cast %103 : vector<16x256xf32> to vector<1x16x256xf32>
    %cst_23 = arith.constant dense<0.000000e+00> : vector<1xf32>
    %105 = vector.multi_reduction <add>, %104, %cst_23 [1, 2] : vector<1x16x256xf32> to vector<1xf32>
    %106 = vector.shape_cast %105 : vector<1xf32> to vector<1x1x1xf32>
    %107 = vector.extract %106[0, 0, 0] : f32 from vector<1x1x1xf32>
    %cst_24 = arith.constant 0.001953125 : f32
    %108 = arith.mulf %107, %cst_24 : f32
    %109 = vector.broadcast %108 : f32 to vector<16x256xf32>
    %110 = arith.subf %103, %109 : vector<16x256xf32>
    %cst_25 = arith.constant 0.000000e+00 : f32
    %111 = vector.broadcast %cst_25 : f32 to vector<16x256xf32>
    %112 = arith.select %3, %110, %111 : vector<16x256xi1>, vector<16x256xf32>
    %113 = arith.mulf %112, %112 : vector<16x256xf32>
    %114 = vector.shape_cast %113 : vector<16x256xf32> to vector<1x16x256xf32>
    %cst_26 = arith.constant dense<0.000000e+00> : vector<1xf32>
    %115 = vector.multi_reduction <add>, %114, %cst_26 [1, 2] : vector<1x16x256xf32> to vector<1xf32>
    %116 = vector.shape_cast %115 : vector<1xf32> to vector<1x1x1xf32>
    %117 = vector.extract %116[0, 0, 0] : f32 from vector<1x1x1xf32>
    %cst_27 = arith.constant 0.001953125 : f32
    %118 = arith.mulf %117, %cst_27 : f32
    %c3 = arith.constant 3 : index
    %119 = memref.load %arg0[%c3] : memref<18xf32, #tpu.memory_space<smem>>
    %cst_28 = arith.constant 9.99999974E-6 : f32
    %120 = arith.addf %118, %cst_28 : f32
    %121 = math.rsqrt %120 : f32
    %122 = arith.mulf %119, %121 : f32
    %c7 = arith.constant 7 : index
    %123 = memref.load %arg0[%c7] : memref<18xf32, #tpu.memory_space<smem>>
    %124 = arith.mulf %108, %122 : f32
    %125 = arith.subf %123, %124 : f32
    %c768_i32_29 = arith.constant 768 : i32
    %126 = vector.broadcast %c768_i32_29 : i32 to vector<1x1024xi32>
    %127 = arith.cmpi sge, %4, %126 : vector<1x1024xi32>
    %c1024_i32 = arith.constant 1024 : i32
    %128 = vector.broadcast %c1024_i32 : i32 to vector<1x1024xi32>
    %129 = arith.cmpi slt, %4, %128 : vector<1x1024xi32>
    %130 = arith.andi %127, %129 : vector<1x1024xi1>
    %131 = vector.broadcast %122 : f32 to vector<1x1024xf32>
    %132 = arith.select %130, %131, %100 : vector<1x1024xi1>, vector<1x1024xf32>
    %133 = vector.broadcast %125 : f32 to vector<1x1024xf32>
    %134 = arith.select %130, %133, %102 : vector<1x1024xi1>, vector<1x1024xf32>
    %135 = vector.broadcast %132 : vector<1x1024xf32> to vector<16x1024xf32>
    %136 = arith.mulf %0, %135 : vector<16x1024xf32>
    %137 = vector.broadcast %134 : vector<1x1024xf32> to vector<16x1024xf32>
    %138 = arith.addf %136, %137 : vector<16x1024xf32>
    %139 = arith.truncf %138 : vector<16x1024xf32> to vector<16x1024xbf16>
    %c0_30 = arith.constant 0 : index
    %c0_31 = arith.constant 0 : index
    %140 = vector.load %arg2[%c0_30, %c0_31] : memref<1024x128xbf16, #tpu.memory_space<vmem>>, vector<1024x128xbf16>
    %cst_32 = arith.constant dense<0.000000e+00> : vector<16x128xf32>
    %141 = tpu.matmul %139, %140, %cst_32 {dimension_numbers = #tpu.dot_dimension_numbers<[1], [0], [0], [1], [0, 0, 1, 1], [], []>} : vector<16x1024xbf16>, vector<1024x128xbf16>, vector<16x128xf32> -> vector<16x128xf32>
    %142 = tpu.iota {dimensions = array<i32: 1>} : vector<1x128xi32>
    %cst_33 = arith.constant 0.000000e+00 : f32
    %143 = vector.broadcast %cst_33 : f32 to vector<1x128xf32>
    %c0_i32_34 = arith.constant 0 : i32
    %144 = vector.broadcast %c0_i32_34 : i32 to vector<1x128xi32>
    %145 = arith.cmpi eq, %142, %144 : vector<1x128xi32>
    %c8 = arith.constant 8 : index
    %146 = memref.load %arg0[%c8] : memref<18xf32, #tpu.memory_space<smem>>
    %147 = vector.broadcast %146 : f32 to vector<1x128xf32>
    %148 = arith.select %145, %147, %143 : vector<1x128xi1>, vector<1x128xf32>
    %c1_i32 = arith.constant 1 : i32
    %149 = vector.broadcast %c1_i32 : i32 to vector<1x128xi32>
    %150 = arith.cmpi eq, %142, %149 : vector<1x128xi32>
    %c9 = arith.constant 9 : index
    %151 = memref.load %arg0[%c9] : memref<18xf32, #tpu.memory_space<smem>>
    %152 = vector.broadcast %151 : f32 to vector<1x128xf32>
    %153 = arith.select %150, %152, %148 : vector<1x128xi1>, vector<1x128xf32>
    %c2_i32_35 = arith.constant 2 : i32
    %154 = vector.broadcast %c2_i32_35 : i32 to vector<1x128xi32>
    %155 = arith.cmpi eq, %142, %154 : vector<1x128xi32>
    %c10 = arith.constant 10 : index
    %156 = memref.load %arg0[%c10] : memref<18xf32, #tpu.memory_space<smem>>
    %157 = vector.broadcast %156 : f32 to vector<1x128xf32>
    %158 = arith.select %155, %157, %153 : vector<1x128xi1>, vector<1x128xf32>
    %c3_i32 = arith.constant 3 : i32
    %159 = vector.broadcast %c3_i32 : i32 to vector<1x128xi32>
    %160 = arith.cmpi eq, %142, %159 : vector<1x128xi32>
    %c11 = arith.constant 11 : index
    %161 = memref.load %arg0[%c11] : memref<18xf32, #tpu.memory_space<smem>>
    %162 = vector.broadcast %161 : f32 to vector<1x128xf32>
    %163 = arith.select %160, %162, %158 : vector<1x128xi1>, vector<1x128xf32>
    %c4_i32 = arith.constant 4 : i32
    %164 = vector.broadcast %c4_i32 : i32 to vector<1x128xi32>
    %165 = arith.cmpi eq, %142, %164 : vector<1x128xi32>
    %c12 = arith.constant 12 : index
    %166 = memref.load %arg0[%c12] : memref<18xf32, #tpu.memory_space<smem>>
    %167 = vector.broadcast %166 : f32 to vector<1x128xf32>
    %168 = arith.select %165, %167, %163 : vector<1x128xi1>, vector<1x128xf32>
    %c5_i32 = arith.constant 5 : i32
    %169 = vector.broadcast %c5_i32 : i32 to vector<1x128xi32>
    %170 = arith.cmpi eq, %142, %169 : vector<1x128xi32>
    %c13 = arith.constant 13 : index
    %171 = memref.load %arg0[%c13] : memref<18xf32, #tpu.memory_space<smem>>
    %172 = vector.broadcast %171 : f32 to vector<1x128xf32>
    %173 = arith.select %170, %172, %168 : vector<1x128xi1>, vector<1x128xf32>
    %c6_i32 = arith.constant 6 : i32
    %174 = vector.broadcast %c6_i32 : i32 to vector<1x128xi32>
    %175 = arith.cmpi eq, %142, %174 : vector<1x128xi32>
    %c14 = arith.constant 14 : index
    %176 = memref.load %arg0[%c14] : memref<18xf32, #tpu.memory_space<smem>>
    %177 = vector.broadcast %176 : f32 to vector<1x128xf32>
    %178 = arith.select %175, %177, %173 : vector<1x128xi1>, vector<1x128xf32>
    %c7_i32 = arith.constant 7 : i32
    %179 = vector.broadcast %c7_i32 : i32 to vector<1x128xi32>
    %180 = arith.cmpi eq, %142, %179 : vector<1x128xi32>
    %c15 = arith.constant 15 : index
    %181 = memref.load %arg0[%c15] : memref<18xf32, #tpu.memory_space<smem>>
    %182 = vector.broadcast %181 : f32 to vector<1x128xf32>
    %183 = arith.select %180, %182, %178 : vector<1x128xi1>, vector<1x128xf32>
    %c8_i32 = arith.constant 8 : i32
    %184 = vector.broadcast %c8_i32 : i32 to vector<1x128xi32>
    %185 = arith.cmpi eq, %142, %184 : vector<1x128xi32>
    %c16 = arith.constant 16 : index
    %186 = memref.load %arg0[%c16] : memref<18xf32, #tpu.memory_space<smem>>
    %187 = vector.broadcast %186 : f32 to vector<1x128xf32>
    %188 = arith.select %185, %187, %183 : vector<1x128xi1>, vector<1x128xf32>
    %c9_i32 = arith.constant 9 : i32
    %189 = vector.broadcast %c9_i32 : i32 to vector<1x128xi32>
    %190 = arith.cmpi eq, %142, %189 : vector<1x128xi32>
    %c17 = arith.constant 17 : index
    %191 = memref.load %arg0[%c17] : memref<18xf32, #tpu.memory_space<smem>>
    %192 = vector.broadcast %191 : f32 to vector<1x128xf32>
    %193 = arith.select %190, %192, %188 : vector<1x128xi1>, vector<1x128xf32>
    %c10_i32 = arith.constant 10 : i32
    %194 = vector.broadcast %c10_i32 : i32 to vector<1x128xi32>
    %195 = arith.cmpi slt, %142, %194 : vector<1x128xi32>
    %196 = vector.broadcast %193 : vector<1x128xf32> to vector<16x128xf32>
    %197 = arith.addf %141, %196 : vector<16x128xf32>
    %cst_36 = arith.constant 0xFF800000 : f32
    %198 = vector.shape_cast %195 : vector<1x128xi1> to vector<1x128xi1>
    %199 = vector.broadcast %198 : vector<1x128xi1> to vector<16x128xi1>
    %200 = vector.broadcast %cst_36 : f32 to vector<16x128xf32>
    %201 = arith.select %199, %197, %200 : vector<16x128xi1>, vector<16x128xf32>
    %cst_37 = arith.constant dense<0xFF800000> : vector<16xf32>
    %202 = vector.multi_reduction <maximumf>, %201, %cst_37 [1] : vector<16x128xf32> to vector<16xf32>
    %203 = vector.shape_cast %202 : vector<16xf32> to vector<16x1xf32>
    %204 = vector.broadcast %203 : vector<16x1xf32> to vector<16x128xf32>
    %205 = arith.subf %201, %204 : vector<16x128xf32>
    %206 = math.exp %205 : vector<16x128xf32>
    %cst_38 = arith.constant dense<0.000000e+00> : vector<16xf32>
    %207 = vector.multi_reduction <add>, %206, %cst_38 [1] : vector<16x128xf32> to vector<16xf32>
    %208 = vector.shape_cast %207 : vector<16xf32> to vector<16x1xf32>
    %209 = vector.broadcast %208 : vector<16x1xf32> to vector<16x128xf32>
    %210 = arith.divf %206, %209 : vector<16x128xf32>
    %c0_39 = arith.constant 0 : index
    %c0_40 = arith.constant 0 : index
    %211 = vector.load %arg3[%c0_39, %c0_40] : memref<16x128xf32, #tpu.memory_space<vmem>>, vector<16x128xf32>
    tpu.vector_store %arg3[%c0_39, %c0_40], %210 {strides = array<i32>} : memref<16x128xf32, #tpu.memory_space<vmem>>, vector<16x128xf32>,
    return
  }
}

</mosaic_0001>

<llo_original>
// kernel: classif_layer_forward.1
$region0: #{classif_layer_forward.1}
  #allocation0 [shape = 'u32[]', space=smem, size = 0x4, offset = 0x4, fixed_abs, tag = 'smem constant byte address 0x4 - core index']
  #allocation1 [shape = 'u32[144,128]{1,0:T(1,128)}', space=vmem, size = 0x12000, scoped, tag = 'internal scratch']
  %s0 = inlined_call_operand.vmem [shape: f32[18], index: 0, kind: input, shape index: {}]
  %s1 = inlined_call_operand.vmem [shape: f32[16,1024], index: 1, kind: input, shape index: {}]
  %s2 = inlined_call_operand.hbm [shape: bf16[1024,128], index: 2, kind: input, shape index: {}]
  %s3 = inlined_call_operand.vmem [shape: f32[16,128], index: 3, kind: output, shape index: {}]
  %s4 = sld [smem:[#allocation0]]
  $region30: #{classif_layer_forward.1} parent=0
    _
  %s6 = ssub.s32 1, %s4
  %s7 = scalar_select 0, %s6, %s4
  $region1: #{classif_layer_forward.1} parent=0
    #allocation2 [shape = 'u8[512]{0}', space=smem, size = 0x200, scoped, tag = 'input window, operand 0, single buffered']
    #allocation3 [shape = 's32[1]{0}', space=sflag, size = 0x4, scoped, tag = 'scoped memory for classif_layer_forward.1']
    #allocation4 [shape = 's32[1]{0}', space=sflag, size = 0x4, scoped, tag = 'scoped memory for classif_layer_forward.1']
    #allocation5 [shape = 'u8[262144]{0}', space=vmem, size = 0x40000, scoped, tag = 'input window, operand 2, single buffered']
    %8 = vsyncpa [#allocation4], 0
    %9 = vsyncpa [#allocation3], 0
    // Predicated region
    $region2: #{classif_layer_forward.1} parent=1 // pred_check
      _
    $region3: #{classif_layer_forward.1} parent=1 // pred_check_branch
      %11 = sbr.rel (0) target = $region5
    $region4: #{classif_layer_forward.1} parent=1 // pred_region
      %s13 = ssub.s32 16, 16
      %14 = vsyncadd [#allocation4], %s13
      %s16 = sshll.u32 %s0, 4
      %s17 = int_to_ptr.vmem [resolvable:$true] %s16
      %19 = dma.vmem_to_smem %s17, 16, [#allocation2], [#allocation4]
    $region5: #{classif_layer_forward.1} parent=1 // pred_fallthru
      _
    // Predicated region
    $region6: #{classif_layer_forward.1} parent=1 // pred_check
      _
    $region7: #{classif_layer_forward.1} parent=1 // pred_check_branch
      %21 = sbr.rel (0) target = $region9
    $region8: #{classif_layer_forward.1} parent=1 // pred_region
      _
    $region9: #{classif_layer_forward.1} parent=1 // pred_fallthru
      _
    // Predicated region
    $region10: #{classif_layer_forward.1} parent=1 // pred_check
      _
    $region11: #{classif_layer_forward.1} parent=1 // pred_check_branch
      %23 = sbr.rel (0) target = $region13
    $region12: #{classif_layer_forward.1} parent=1 // pred_region
      %s25 = ssub.s32 8192, 8192
      %26 = vsyncadd [#allocation3], %s25
      %s27 = sshll.u32 [#allocation5], 4
      %s28 = int_to_ptr.vmem [resolvable:$true] %s27
      %33 = dma.hbm_to_vmem [thread:$0]  %s2, 8192, %s28, [#allocation3], 64, 64, 4
    $region13: #{classif_layer_forward.1} parent=1 // pred_fallthru
      _
    // Predicated region
    $region14: #{classif_layer_forward.1} parent=1 // pred_check
      _
    $region15: #{classif_layer_forward.1} parent=1 // pred_check_branch
      %35 = sbr.rel (0) target = $region17
    $region16: #{classif_layer_forward.1} parent=1 // pred_region
      %36 = dma.done [#allocation4], 16
    $region17: #{classif_layer_forward.1} parent=1 // pred_fallthru
      _
    // Predicated region
    $region18: #{classif_layer_forward.1} parent=1 // pred_check
      _
    $region19: #{classif_layer_forward.1} parent=1 // pred_check_branch
      %38 = sbr.rel (0) target = $region21
    $region20: #{classif_layer_forward.1} parent=1 // pred_region
      %39 = dma.done [#allocation3], 8192
    $region21: #{classif_layer_forward.1} parent=1 // pred_fallthru
      _
    %40 = sfence
    %v42 = vld [vmem:[%s1] sm:$0xff]
    %v43 = vld [vmem:[%s1 + $0x8] sm:$0xff]
    %v44 = vld [vmem:[%s1 + $0x10] sm:$0xff]
    %v45 = vld [vmem:[%s1 + $0x18] sm:$0xff]
    %v46 = vld [vmem:[%s1 + $0x20] sm:$0xff]
    %v47 = vld [vmem:[%s1 + $0x28] sm:$0xff]
    %v48 = vld [vmem:[%s1 + $0x30] sm:$0xff]
    %v49 = vld [vmem:[%s1 + $0x38] sm:$0xff]
    %v50 = vld [vmem:[%s1 + $0x40] sm:$0xff]
    %v51 = vld [vmem:[%s1 + $0x48] sm:$0xff]
    %v52 = vld [vmem:[%s1 + $0x50] sm:$0xff]
    %v53 = vld [vmem:[%s1 + $0x58] sm:$0xff]
    %v54 = vld [vmem:[%s1 + $0x60] sm:$0xff]
    %v55 = vld [vmem:[%s1 + $0x68] sm:$0xff]
    %v56 = vld [vmem:[%s1 + $0x70] sm:$0xff]
    %v57 = vld [vmem:[%s1 + $0x78] sm:$0xff]
    %v58 = vlaneseq
    %v59 = vshrl.u32 %v58, 7
    %v60 = vadd.s32 %v59, 8
    %vm61 = vcmp.lt.s32.totalorder %v59, 2
    %vm62 = vcmp.lt.s32.totalorder %v60, 2
    %v63 = vlaneseq
    %v64 = vand.u32 %v63, 127
    %v65 = vadd.s32 %v64, 128
    %v66 = vadd.s32 %v64, 256
    %v67 = vadd.s32 %v64, 384
    %v68 = vadd.s32 %v64, 512
    %v69 = vadd.s32 %v64, 640
    %v70 = vadd.s32 %v64, 768
    %v71 = vadd.s32 %v64, 896
    %v72 = vadd.f32 %v42, %v43
    %v73 = vadd.f32 %v72, %v50
    %v74 = vadd.f32 %v73, %v51
    %75 = vadd.xlane.f32.xlu0 %v74
    %v76 = vpop.xlane.xlu0 %75
    %v77 = vrot.slane %v76, 4
    %v78 = vadd.f32 %v76, %v77
    %v79 = vrot.slane %v78, 2
    %v80 = vadd.f32 %v78, %v79
    %v81 = vrot.slane %v80, 1
    %v82 = vadd.f32 %v80, %v81
    %s83 = vtos %v82
    %s84 = smul.f32 %s83, 0.001953125
    %v85 = vstv %s84
    %v86 = vsub.f32 %v42, %v85
    %v87 = vsub.f32 %v43, %v85
    %v88 = vsub.f32 %v50, %v85
    %v89 = vsub.f32 %v51, %v85
    %v90 = vsel %vm61, %v86, 0.0
    %v91 = vsel %vm61, %v87, 0.0
    %v92 = vsel %vm62, %v88, 0.0
    %v93 = vsel %vm62, %v89, 0.0
    %v94 = vmul.f32 %v90, %v90
    %v95 = vmul.f32 %v91, %v91
    %v96 = vmul.f32 %v92, %v92
    %v97 = vmul.f32 %v93, %v93
    %v98 = vadd.f32 %v94, %v95
    %v99 = vadd.f32 %v98, %v96
    %v100 = vadd.f32 %v99, %v97
    %101 = vadd.xlane.f32.xlu0 %v100
    %v102 = vpop.xlane.xlu0 %101
    %v103 = vrot.slane %v102, 4
    %v104 = vadd.f32 %v102, %v103
    %v105 = vrot.slane %v104, 2
    %v106 = vadd.f32 %v104, %v105
    %v107 = vrot.slane %v106, 1
    %v108 = vadd.f32 %v106, %v107
    %s109 = vtos %v108
    %s110 = smul.f32 %s109, 0.001953125
    %s111 = sld [smem:[#allocation2]]
    %s112 = sadd.f32 %s110, 1e-05
    %v113 = vstv %s112
    %v114 = vrsqrt.pop %v113
    %s115 = vtos %v114
    %s116 = smul.f32 %s111, %s115
    %s117 = sld [smem:[#allocation2 + $0x4]]
    %s118 = smul.f32 %s84, %s116
    %s119 = ssub.f32 %s117, %s118
    %vm120 = vcmp.ge.s32.totalorder %v64, 0
    %vm121 = vcmp.ge.s32.totalorder %v65, 0
    %vm122 = vcmp.ge.s32.totalorder %v66, 0
    %vm123 = vcmp.ge.s32.totalorder %v67, 0
    %vm124 = vcmp.ge.s32.totalorder %v68, 0
    %vm125 = vcmp.ge.s32.totalorder %v69, 0
    %vm126 = vcmp.ge.s32.totalorder %v70, 0
    %vm127 = vcmp.ge.s32.totalorder %v71, 0
    %vm128 = vcmp.lt.s32.totalorder %v64, 256
    %vm129 = vcmp.lt.s32.totalorder %v65, 256
    %vm130 = vcmp.lt.s32.totalorder %v66, 256
    %vm131 = vcmp.lt.s32.totalorder %v67, 256
    %vm132 = vcmp.lt.s32.totalorder %v68, 256
    %vm133 = vcmp.lt.s32.totalorder %v69, 256
    %vm134 = vcmp.lt.s32.totalorder %v70, 256
    %vm135 = vcmp.lt.s32.totalorder %v71, 256
    %vm136 = vmand %vm120, %vm128
    %vm137 = vmand %vm121, %vm129
    %vm138 = vmand %vm122, %vm130
    %vm139 = vmand %vm123, %vm131
    %vm140 = vmand %vm124, %vm132
    %vm141 = vmand %vm125, %vm133
    %vm142 = vmand %vm126, %vm134
    %vm143 = vmand %vm127, %vm135
    %v144 = vstv %s116
    %v145 = vsel %vm136, %v144, 0.0
    %v146 = vsel %vm137, %v144, 0.0
    %v147 = vsel %vm138, %v144, 0.0
    %v148 = vsel %vm139, %v144, 0.0
    %v149 = vsel %vm140, %v144, 0.0
    %v150 = vsel %vm141, %v144, 0.0
    %v151 = vsel %vm142, %v144, 0.0
    %v152 = vsel %vm143, %v144, 0.0
    %v153 = vstv %s119
    %v154 = vsel %vm136, %v153, 0.0
    %v155 = vsel %vm137, %v153, 0.0
    %v156 = vsel %vm138, %v153, 0.0
    %v157 = vsel %vm139, %v153, 0.0
    %v158 = vsel %vm140, %v153, 0.0
    %v159 = vsel %vm141, %v153, 0.0
    %v160 = vsel %vm142, %v153, 0.0
    %v161 = vsel %vm143, %v153, 0.0
    %v162 = vadd.f32 %v44, %v45
    %v163 = vadd.f32 %v162, %v52
    %v164 = vadd.f32 %v163, %v53
    %165 = vadd.xlane.f32.xlu0 %v164
    %v166 = vpop.xlane.xlu0 %165
    %v167 = vrot.slane %v166, 4
    %v168 = vadd.f32 %v166, %v167
    %v169 = vrot.slane %v168, 2
    %v170 = vadd.f32 %v168, %v169
    %v171 = vrot.slane %v170, 1
    %v172 = vadd.f32 %v170, %v171
    %s173 = vtos %v172
    %s174 = smul.f32 %s173, 0.001953125
    %v175 = vstv %s174
    %v176 = vsub.f32 %v44, %v175
    %v177 = vsub.f32 %v45, %v175
    %v178 = vsub.f32 %v52, %v175
    %v179 = vsub.f32 %v53, %v175
    %v180 = vsel %vm61, %v176, 0.0
    %v181 = vsel %vm61, %v177, 0.0
    %v182 = vsel %vm62, %v178, 0.0
    %v183 = vsel %vm62, %v179, 0.0
    %v184 = vmul.f32 %v180, %v180
    %v185 = vmul.f32 %v181, %v181
    %v186 = vmul.f32 %v182, %v182
    %v187 = vmul.f32 %v183, %v183
    %v188 = vadd.f32 %v184, %v185
    %v189 = vadd.f32 %v188, %v186
    %v190 = vadd.f32 %v189, %v187
    %191 = vadd.xlane.f32.xlu0 %v190
    %v192 = vpop.xlane.xlu0 %191
    %v193 = vrot.slane %v192, 4
    %v194 = vadd.f32 %v192, %v193
    %v195 = vrot.slane %v194, 2
    %v196 = vadd.f32 %v194, %v195
    %v197 = vrot.slane %v196, 1
    %v198 = vadd.f32 %v196, %v197
    %s199 = vtos %v198
    %s200 = smul.f32 %s199, 0.001953125
    %s201 = sld [smem:[#allocation2 + $0x1]]
    %s202 = sadd.f32 %s200, 1e-05
    %v203 = vstv %s202
    %v204 = vrsqrt.pop %v203
    %s205 = vtos %v204
    %s206 = smul.f32 %s201, %s205
    %s207 = sld [smem:[#allocation2 + $0x5]]
    %s208 = smul.f32 %s174, %s206
    %s209 = ssub.f32 %s207, %s208
    %vm210 = vcmp.ge.s32.totalorder %v64, 256
    %vm211 = vcmp.ge.s32.totalorder %v65, 256
    %vm212 = vcmp.ge.s32.totalorder %v66, 256
    %vm213 = vcmp.ge.s32.totalorder %v67, 256
    %vm214 = vcmp.ge.s32.totalorder %v68, 256
    %vm215 = vcmp.ge.s32.totalorder %v69, 256
    %vm216 = vcmp.ge.s32.totalorder %v70, 256
    %vm217 = vcmp.ge.s32.totalorder %v71, 256
    %vm218 = vcmp.lt.s32.totalorder %v64, 512
    %vm219 = vcmp.lt.s32.totalorder %v65, 512
    %vm220 = vcmp.lt.s32.totalorder %v66, 512
    %vm221 = vcmp.lt.s32.totalorder %v67, 512
    %vm222 = vcmp.lt.s32.totalorder %v68, 512
    %vm223 = vcmp.lt.s32.totalorder %v69, 512
    %vm224 = vcmp.lt.s32.totalorder %v70, 512
    %vm225 = vcmp.lt.s32.totalorder %v71, 512
    %vm226 = vmand %vm210, %vm218
    %vm227 = vmand %vm211, %vm219
    %vm228 = vmand %vm212, %vm220
    %vm229 = vmand %vm213, %vm221
    %vm230 = vmand %vm214, %vm222
    %vm231 = vmand %vm215, %vm223
    %vm232 = vmand %vm216, %vm224
    %vm233 = vmand %vm217, %vm225
    %v234 = vstv %s206
    %v235 = vsel %vm226, %v234, %v145
    %v236 = vsel %vm227, %v234, %v146
    %v237 = vsel %vm228, %v234, %v147
    %v238 = vsel %vm229, %v234, %v148
    %v239 = vsel %vm230, %v234, %v149
    %v240 = vsel %vm231, %v234, %v150
    %v241 = vsel %vm232, %v234, %v151
    %v242 = vsel %vm233, %v234, %v152
    %v243 = vstv %s209
    %v244 = vsel %vm226, %v243, %v154
    %v245 = vsel %vm227, %v243, %v155
    %v246 = vsel %vm228, %v243, %v156
    %v247 = vsel %vm229, %v243, %v157
    %v248 = vsel %vm230, %v243, %v158
    %v249 = vsel %vm231, %v243, %v159
    %v250 = vsel %vm232, %v243, %v160
    %v251 = vsel %vm233, %v243, %v161
    %v252 = vadd.f32 %v46, %v47
    %v253 = vadd.f32 %v252, %v54
    %v254 = vadd.f32 %v253, %v55
    %255 = vadd.xlane.f32.xlu0 %v254
    %v256 = vpop.xlane.xlu0 %255
    %v257 = vrot.slane %v256, 4
    %v258 = vadd.f32 %v256, %v257
    %v259 = vrot.slane %v258, 2
    %v260 = vadd.f32 %v258, %v259
    %v261 = vrot.slane %v260, 1
    %v262 = vadd.f32 %v260, %v261
    %s263 = vtos %v262
    %s264 = smul.f32 %s263, 0.001953125
    %v265 = vstv %s264
    %v266 = vsub.f32 %v46, %v265
    %v267 = vsub.f32 %v47, %v265
    %v268 = vsub.f32 %v54, %v265
    %v269 = vsub.f32 %v55, %v265
    %v270 = vsel %vm61, %v266, 0.0
    %v271 = vsel %vm61, %v267, 0.0
    %v272 = vsel %vm62, %v268, 0.0
    %v273 = vsel %vm62, %v269, 0.0
    %v274 = vmul.f32 %v270, %v270
    %v275 = vmul.f32 %v271, %v271
    %v276 = vmul.f32 %v272, %v272
    %v277 = vmul.f32 %v273, %v273
    %v278 = vadd.f32 %v274, %v275
    %v279 = vadd.f32 %v278, %v276
    %v280 = vadd.f32 %v279, %v277
    %281 = vadd.xlane.f32.xlu0 %v280
    %v282 = vpop.xlane.xlu0 %281
    %v283 = vrot.slane %v282, 4
    %v284 = vadd.f32 %v282, %v283
    %v285 = vrot.slane %v284, 2
    %v286 = vadd.f32 %v284, %v285
    %v287 = vrot.slane %v286, 1
    %v288 = vadd.f32 %v286, %v287
    %s289 = vtos %v288
    %s290 = smul.f32 %s289, 0.001953125
    %s291 = sld [smem:[#allocation2 + $0x2]]
    %s292 = sadd.f32 %s290, 1e-05
    %v293 = vstv %s292
    %v294 = vrsqrt.pop %v293
    %s295 = vtos %v294
    %s296 = smul.f32 %s291, %s295
    %s297 = sld [smem:[#allocation2 + $0x6]]
    %s298 = smul.f32 %s264, %s296
    %s299 = ssub.f32 %s297, %s298
    %vm300 = vcmp.ge.s32.totalorder %v64, 512
    %vm301 = vcmp.ge.s32.totalorder %v65, 512
    %vm302 = vcmp.ge.s32.totalorder %v66, 512
    %vm303 = vcmp.ge.s32.totalorder %v67, 512
    %vm304 = vcmp.ge.s32.totalorder %v68, 512
    %vm305 = vcmp.ge.s32.totalorder %v69, 512
    %vm306 = vcmp.ge.s32.totalorder %v70, 512
    %vm307 = vcmp.ge.s32.totalorder %v71, 512
    %vm308 = vcmp.lt.s32.totalorder %v64, 768
    %vm309 = vcmp.lt.s32.totalorder %v65, 768
    %vm310 = vcmp.lt.s32.totalorder %v66, 768
    %vm311 = vcmp.lt.s32.totalorder %v67, 768
    %vm312 = vcmp.lt.s32.totalorder %v68, 768
    %vm313 = vcmp.lt.s32.totalorder %v69, 768
    %vm314 = vcmp.lt.s32.totalorder %v70, 768
    %vm315 = vcmp.lt.s32.totalorder %v71, 768
    %vm316 = vmand %vm300, %vm308
    %vm317 = vmand %vm301, %vm309
    %vm318 = vmand %vm302, %vm310
    %vm319 = vmand %vm303, %vm311
    %vm320 = vmand %vm304, %vm312
    %vm321 = vmand %vm305, %vm313
    %vm322 = vmand %vm306, %vm314
    %vm323 = vmand %vm307, %vm315
    %v324 = vstv %s296
    %v325 = vsel %vm316, %v324, %v235
    %v326 = vsel %vm317, %v324, %v236
    %v327 = vsel %vm318, %v324, %v237
    %v328 = vsel %vm319, %v324, %v238
    %v329 = vsel %vm320, %v324, %v239
    %v330 = vsel %vm321, %v324, %v240
    %v331 = vsel %vm322, %v324, %v241
    %v332 = vsel %vm323, %v324, %v242
    %v333 = vstv %s299
    %v334 = vsel %vm316, %v333, %v244
    %v335 = vsel %vm317, %v333, %v245
    %v336 = vsel %vm318, %v333, %v246
    %v337 = vsel %vm319, %v333, %v247
    %v338 = vsel %vm320, %v333, %v248
    %v339 = vsel %vm321, %v333, %v249
    %v340 = vsel %vm322, %v333, %v250
    %v341 = vsel %vm323, %v333, %v251
    %v342 = vadd.f32 %v48, %v49
    %v343 = vadd.f32 %v342, %v56
    %v344 = vadd.f32 %v343, %v57
    %345 = vadd.xlane.f32.xlu0 %v344
    %v346 = vpop.xlane.xlu0 %345
    %v347 = vrot.slane %v346, 4
    %v348 = vadd.f32 %v346, %v347
    %v349 = vrot.slane %v348, 2
    %v350 = vadd.f32 %v348, %v349
    %v351 = vrot.slane %v350, 1
    %v352 = vadd.f32 %v350, %v351
    %s353 = vtos %v352
    %s354 = smul.f32 %s353, 0.001953125
    %v355 = vstv %s354
    %v356 = vsub.f32 %v48, %v355
    %v357 = vsub.f32 %v49, %v355
    %v358 = vsub.f32 %v56, %v355
    %v359 = vsub.f32 %v57, %v355
    %v360 = vsel %vm61, %v356, 0.0
    %v361 = vsel %vm61, %v357, 0.0
    %v362 = vsel %vm62, %v358, 0.0
    %v363 = vsel %vm62, %v359, 0.0
    %v364 = vmul.f32 %v360, %v360
    %v365 = vmul.f32 %v361, %v361
    %v366 = vmul.f32 %v362, %v362
    %v367 = vmul.f32 %v363, %v363
    %v368 = vadd.f32 %v364, %v365
    %v369 = vadd.f32 %v368, %v366
    %v370 = vadd.f32 %v369, %v367
    %371 = vadd.xlane.f32.xlu0 %v370
    %v372 = vpop.xlane.xlu0 %371
    %v373 = vrot.slane %v372, 4
    %v374 = vadd.f32 %v372, %v373
    %v375 = vrot.slane %v374, 2
    %v376 = vadd.f32 %v374, %v375
    %v377 = vrot.slane %v376, 1
    %v378 = vadd.f32 %v376, %v377
    %s379 = vtos %v378
    %s380 = smul.f32 %s379, 0.001953125
    %s381 = sld [smem:[#allocation2 + $0x3]]
    %s382 = sadd.f32 %s380, 1e-05
    %v383 = vstv %s382
    %v384 = vrsqrt.pop %v383
    %s385 = vtos %v384
    %s386 = smul.f32 %s381, %s385
    %s387 = sld [smem:[#allocation2 + $0x7]]
    %s388 = smul.f32 %s354, %s386
    %s389 = ssub.f32 %s387, %s388
    %vm390 = vcmp.ge.s32.totalorder %v64, 768
    %vm391 = vcmp.ge.s32.totalorder %v65, 768
    %vm392 = vcmp.ge.s32.totalorder %v66, 768
    %vm393 = vcmp.ge.s32.totalorder %v67, 768
    %vm394 = vcmp.ge.s32.totalorder %v68, 768
    %vm395 = vcmp.ge.s32.totalorder %v69, 768
    %vm396 = vcmp.ge.s32.totalorder %v70, 768
    %vm397 = vcmp.ge.s32.totalorder %v71, 768
    %vm398 = vcmp.lt.s32.totalorder %v64, 1024
    %vm399 = vcmp.lt.s32.totalorder %v65, 1024
    %vm400 = vcmp.lt.s32.totalorder %v66, 1024
    %vm401 = vcmp.lt.s32.totalorder %v67, 1024
    %vm402 = vcmp.lt.s32.totalorder %v68, 1024
    %vm403 = vcmp.lt.s32.totalorder %v69, 1024
    %vm404 = vcmp.lt.s32.totalorder %v70, 1024
    %vm405 = vcmp.lt.s32.totalorder %v71, 1024
    %vm406 = vmand %vm390, %vm398
    %vm407 = vmand %vm391, %vm399
    %vm408 = vmand %vm392, %vm400
    %vm409 = vmand %vm393, %vm401
    %vm410 = vmand %vm394, %vm402
    %vm411 = vmand %vm395, %vm403
    %vm412 = vmand %vm396, %vm404
    %vm413 = vmand %vm397, %vm405
    %v414 = vstv %s386
    %v415 = vsel %vm406, %v414, %v325
    %v416 = vsel %vm407, %v414, %v326
    %v417 = vsel %vm408, %v414, %v327
    %v418 = vsel %vm409, %v414, %v328
    %v419 = vsel %vm410, %v414, %v329
    %v420 = vsel %vm411, %v414, %v330
    %v421 = vsel %vm412, %v414, %v331
    %v422 = vsel %vm413, %v414, %v332
    %v423 = vstv %s389
    %v424 = vsel %vm406, %v423, %v334
    %v425 = vsel %vm407, %v423, %v335
    %v426 = vsel %vm408, %v423, %v336
    %v427 = vsel %vm409, %v423, %v337
    %v428 = vsel %vm410, %v423, %v338
    %v429 = vsel %vm411, %v423, %v339
    %v430 = vsel %vm412, %v423, %v340
    %v431 = vsel %vm413, %v423, %v341
    %v432 = vmul.f32 %v42, %v415
    %v433 = vmul.f32 %v43, %v416
    %v434 = vmul.f32 %v44, %v417
    %v435 = vmul.f32 %v45, %v418
    %v436 = vmul.f32 %v46, %v419
    %v437 = vmul.f32 %v47, %v420
    %v438 = vmul.f32 %v48, %v421
    %v439 = vmul.f32 %v49, %v422
    %v440 = vmul.f32 %v50, %v415
    %v441 = vmul.f32 %v51, %v416
    %v442 = vmul.f32 %v52, %v417
    %v443 = vmul.f32 %v53, %v418
    %v444 = vmul.f32 %v54, %v419
    %v445 = vmul.f32 %v55, %v420
    %v446 = vmul.f32 %v56, %v421
    %v447 = vmul.f32 %v57, %v422
    %v448 = vadd.f32 %v432, %v424
    %v449 = vadd.f32 %v433, %v425
    %v450 = vadd.f32 %v434, %v426
    %v451 = vadd.f32 %v435, %v427
    %v452 = vadd.f32 %v436, %v428
    %v453 = vadd.f32 %v437, %v429
    %v454 = vadd.f32 %v438, %v430
    %v455 = vadd.f32 %v439, %v431
    %v456 = vadd.f32 %v440, %v424
    %v457 = vadd.f32 %v441, %v425
    %v458 = vadd.f32 %v442, %v426
    %v459 = vadd.f32 %v443, %v427
    %v460 = vadd.f32 %v444, %v428
    %v461 = vadd.f32 %v445, %v429
    %v462 = vadd.f32 %v446, %v430
    %v463 = vadd.f32 %v447, %v431
    %v464 = vpack.c.bf16 %v456, %v448
    %v465 = vpack.c.bf16 %v457, %v449
    %v466 = vpack.c.bf16 %v458, %v450
    %v467 = vpack.c.bf16 %v459, %v451
    %v468 = vpack.c.bf16 %v460, %v452
    %v469 = vpack.c.bf16 %v461, %v453
    %v470 = vpack.c.bf16 %v462, %v454
    %v471 = vpack.c.bf16 %v463, %v455
    %v472 = vld [vmem:[#allocation5] sm:$0xf]
    %v473 = vld [vmem:[#allocation5 + $0x4] sm:$0xf]
    %v474 = vld [vmem:[#allocation5 + $0x8] sm:$0xf]
    %v475 = vld [vmem:[#allocation5 + $0xc] sm:$0xf]
    %v476 = vld [vmem:[#allocation5 + $0x10] sm:$0xf]
    %v477 = vld [vmem:[#allocation5 + $0x14] sm:$0xf]
    %v478 = vld [vmem:[#allocation5 + $0x18] sm:$0xf]
    %v479 = vld [vmem:[#allocation5 + $0x1c] sm:$0xf]
    %v480 = vld [vmem:[#allocation5 + $0x20] sm:$0xf]
    %v481 = vld [vmem:[#allocation5 + $0x24] sm:$0xf]
    %v482 = vld [vmem:[#allocation5 + $0x28] sm:$0xf]
    %v483 = vld [vmem:[#allocation5 + $0x2c] sm:$0xf]
    %v484 = vld [vmem:[#allocation5 + $0x30] sm:$0xf]
    %v485 = vld [vmem:[#allocation5 + $0x34] sm:$0xf]
    %v486 = vld [vmem:[#allocation5 + $0x38] sm:$0xf]
    %v487 = vld [vmem:[#allocation5 + $0x3c] sm:$0xf]
    %v488 = vld [vmem:[#allocation5 + $0x40] sm:$0xf]
    %v489 = vld [vmem:[#allocation5 + $0x44] sm:$0xf]
    %v490 = vld [vmem:[#allocation5 + $0x48] sm:$0xf]
    %v491 = vld [vmem:[#allocation5 + $0x4c] sm:$0xf]
    %v492 = vld [vmem:[#allocation5 + $0x50] sm:$0xf]
    %v493 = vld [vmem:[#allocation5 + $0x54] sm:$0xf]
    %v494 = vld [vmem:[#allocation5 + $0x58] sm:$0xf]
    %v495 = vld [vmem:[#allocation5 + $0x5c] sm:$0xf]
    %v496 = vld [vmem:[#allocation5 + $0x60] sm:$0xf]
    %v497 = vld [vmem:[#allocation5 + $0x64] sm:$0xf]
    %v498 = vld [vmem:[#allocation5 + $0x68] sm:$0xf]
    %v499 = vld [vmem:[#allocation5 + $0x6c] sm:$0xf]
    %v500 = vld [vmem:[#allocation5 + $0x70] sm:$0xf]
    %v501 = vld [vmem:[#allocation5 + $0x74] sm:$0xf]
    %v502 = vld [vmem:[#allocation5 + $0x78] sm:$0xf]
    %v503 = vld [vmem:[#allocation5 + $0x7c] sm:$0xf]
    %v504 = vld [vmem:[#allocation5 + $0x80] sm:$0xf]
    %v505 = vld [vmem:[#allocation5 + $0x84] sm:$0xf]
    %v506 = vld [vmem:[#allocation5 + $0x88] sm:$0xf]
    %v507 = vld [vmem:[#allocation5 + $0x8c] sm:$0xf]
    %v508 = vld [vmem:[#allocation5 + $0x90] sm:$0xf]
    %v509 = vld [vmem:[#allocation5 + $0x94] sm:$0xf]
    %v510 = vld [vmem:[#allocation5 + $0x98] sm:$0xf]
    %v511 = vld [vmem:[#allocation5 + $0x9c] sm:$0xf]
    %v512 = vld [vmem:[#allocation5 + $0xa0] sm:$0xf]
    %v513 = vld [vmem:[#allocation5 + $0xa4] sm:$0xf]
    %v514 = vld [vmem:[#allocation5 + $0xa8] sm:$0xf]
    %v515 = vld [vmem:[#allocation5 + $0xac] sm:$0xf]
    %v516 = vld [vmem:[#allocation5 + $0xb0] sm:$0xf]
    %v517 = vld [vmem:[#allocation5 + $0xb4] sm:$0xf]
    %v518 = vld [vmem:[#allocation5 + $0xb8] sm:$0xf]
    %v519 = vld [vmem:[#allocation5 + $0xbc] sm:$0xf]
    %v520 = vld [vmem:[#allocation5 + $0xc0] sm:$0xf]
    %v521 = vld [vmem:[#allocation5 + $0xc4] sm:$0xf]
    %v522 = vld [vmem:[#allocation5 + $0xc8] sm:$0xf]
    %v523 = vld [vmem:[#allocation5 + $0xcc] sm:$0xf]
    %v524 = vld [vmem:[#allocation5 + $0xd0] sm:$0xf]
    %v525 = vld [vmem:[#allocation5 + $0xd4] sm:$0xf]
    %v526 = vld [vmem:[#allocation5 + $0xd8] sm:$0xf]
    %v527 = vld [vmem:[#allocation5 + $0xdc] sm:$0xf]
    %v528 = vld [vmem:[#allocation5 + $0xe0] sm:$0xf]
    %v529 = vld [vmem:[#allocation5 + $0xe4] sm:$0xf]
    %v530 = vld [vmem:[#allocation5 + $0xe8] sm:$0xf]
    %v531 = vld [vmem:[#allocation5 + $0xec] sm:$0xf]
    %v532 = vld [vmem:[#allocation5 + $0xf0] sm:$0xf]
    %v533 = vld [vmem:[#allocation5 + $0xf4] sm:$0xf]
    %v534 = vld [vmem:[#allocation5 + $0xf8] sm:$0xf]
    %v535 = vld [vmem:[#allocation5 + $0xfc] sm:$0xf]
    %v536 = vld [vmem:[#allocation5 + $0x100] sm:$0xf]
    %v537 = vld [vmem:[#allocation5 + $0x104] sm:$0xf]
    %v538 = vld [vmem:[#allocation5 + $0x108] sm:$0xf]
    %v539 = vld [vmem:[#allocation5 + $0x10c] sm:$0xf]
    %v540 = vld [vmem:[#allocation5 + $0x110] sm:$0xf]
    %v541 = vld [vmem:[#allocation5 + $0x114] sm:$0xf]
    %v542 = vld [vmem:[#allocation5 + $0x118] sm:$0xf]
    %v543 = vld [vmem:[#allocation5 + $0x11c] sm:$0xf]
    %v544 = vld [vmem:[#allocation5 + $0x120] sm:$0xf]
    %v545 = vld [vmem:[#allocation5 + $0x124] sm:$0xf]
    %v546 = vld [vmem:[#allocation5 + $0x128] sm:$0xf]
    %v547 = vld [vmem:[#allocation5 + $0x12c] sm:$0xf]
    %v548 = vld [vmem:[#allocation5 + $0x130] sm:$0xf]
    %v549 = vld [vmem:[#allocation5 + $0x134] sm:$0xf]
    %v550 = vld [vmem:[#allocation5 + $0x138] sm:$0xf]
    %v551 = vld [vmem:[#allocation5 + $0x13c] sm:$0xf]
    %v552 = vld [vmem:[#allocation5 + $0x140] sm:$0xf]
    %v553 = vld [vmem:[#allocation5 + $0x144] sm:$0xf]
    %v554 = vld [vmem:[#allocation5 + $0x148] sm:$0xf]
    %v555 = vld [vmem:[#allocation5 + $0x14c] sm:$0xf]
    %v556 = vld [vmem:[#allocation5 + $0x150] sm:$0xf]
    %v557 = vld [vmem:[#allocation5 + $0x154] sm:$0xf]
    %v558 = vld [vmem:[#allocation5 + $0x158] sm:$0xf]
    %v559 = vld [vmem:[#allocation5 + $0x15c] sm:$0xf]
    %v560 = vld [vmem:[#allocation5 + $0x160] sm:$0xf]
    %v561 = vld [vmem:[#allocation5 + $0x164] sm:$0xf]
    %v562 = vld [vmem:[#allocation5 + $0x168] sm:$0xf]
    %v563 = vld [vmem:[#allocation5 + $0x16c] sm:$0xf]
    %v564 = vld [vmem:[#allocation5 + $0x170] sm:$0xf]
    %v565 = vld [vmem:[#allocation5 + $0x174] sm:$0xf]
    %v566 = vld [vmem:[#allocation5 + $0x178] sm:$0xf]
    %v567 = vld [vmem:[#allocation5 + $0x17c] sm:$0xf]
    %v568 = vld [vmem:[#allocation5 + $0x180] sm:$0xf]
    %v569 = vld [vmem:[#allocation5 + $0x184] sm:$0xf]
    %v570 = vld [vmem:[#allocation5 + $0x188] sm:$0xf]
    %v571 = vld [vmem:[#allocation5 + $0x18c] sm:$0xf]
    %v572 = vld [vmem:[#allocation5 + $0x190] sm:$0xf]
    %v573 = vld [vmem:[#allocation5 + $0x194] sm:$0xf]
    %v574 = vld [vmem:[#allocation5 + $0x198] sm:$0xf]
    %v575 = vld [vmem:[#allocation5 + $0x19c] sm:$0xf]
    %v576 = vld [vmem:[#allocation5 + $0x1a0] sm:$0xf]
    %v577 = vld [vmem:[#allocation5 + $0x1a4] sm:$0xf]
    %v578 = vld [vmem:[#allocation5 + $0x1a8] sm:$0xf]
    %v579 = vld [vmem:[#allocation5 + $0x1ac] sm:$0xf]
    %v580 = vld [vmem:[#allocation5 + $0x1b0] sm:$0xf]
    %v581 = vld [vmem:[#allocation5 + $0x1b4] sm:$0xf]
    %v582 = vld [vmem:[#allocation5 + $0x1b8] sm:$0xf]
    %v583 = vld [vmem:[#allocation5 + $0x1bc] sm:$0xf]
    %v584 = vld [vmem:[#allocation5 + $0x1c0] sm:$0xf]
    %v585 = vld [vmem:[#allocation5 + $0x1c4] sm:$0xf]
    %v586 = vld [vmem:[#allocation5 + $0x1c8] sm:$0xf]
    %v587 = vld [vmem:[#allocation5 + $0x1cc] sm:$0xf]
    %v588 = vld [vmem:[#allocation5 + $0x1d0] sm:$0xf]
    %v589 = vld [vmem:[#allocation5 + $0x1d4] sm:$0xf]
    %v590 = vld [vmem:[#allocation5 + $0x1d8] sm:$0xf]
    %v591 = vld [vmem:[#allocation5 + $0x1dc] sm:$0xf]
    %v592 = vld [vmem:[#allocation5 + $0x1e0] sm:$0xf]
    %v593 = vld [vmem:[#allocation5 + $0x1e4] sm:$0xf]
    %v594 = vld [vmem:[#allocation5 + $0x1e8] sm:$0xf]
    %v595 = vld [vmem:[#allocation5 + $0x1ec] sm:$0xf]
    %v596 = vld [vmem:[#allocation5 + $0x1f0] sm:$0xf]
    %v597 = vld [vmem:[#allocation5 + $0x1f4] sm:$0xf]
    %v598 = vld [vmem:[#allocation5 + $0x1f8] sm:$0xf]
    %v599 = vld [vmem:[#allocation5 + $0x1fc] sm:$0xf]
    %vm600 = vcmp.eq.s32.totalorder %v64, 0
    %s601 = sld [smem:[#allocation2 + $0x8]]
    %v602 = vstv %s601
    %v603 = vsel %vm600, %v602, 0.0
    %vm604 = vcmp.eq.s32.totalorder %v64, 1
    %s605 = sld [smem:[#allocation2 + $0x9]]
    %v606 = vstv %s605
    %v607 = vsel %vm604, %v606, %v603
    %vm608 = vcmp.eq.s32.totalorder %v64, 2
    %s609 = sld [smem:[#allocation2 + $0xa]]
    %v610 = vstv %s609
    %v611 = vsel %vm608, %v610, %v607
    %vm612 = vcmp.eq.s32.totalorder %v64, 3
    %s613 = sld [smem:[#allocation2 + $0xb]]
    %v614 = vstv %s613
    %v615 = vsel %vm612, %v614, %v611
    %vm616 = vcmp.eq.s32.totalorder %v64, 4
    %s617 = sld [smem:[#allocation2 + $0xc]]
    %v618 = vstv %s617
    %v619 = vsel %vm616, %v618, %v615
    %vm620 = vcmp.eq.s32.totalorder %v64, 5
    %s621 = sld [smem:[#allocation2 + $0xd]]
    %v622 = vstv %s621
    %v623 = vsel %vm620, %v622, %v619
    %vm624 = vcmp.eq.s32.totalorder %v64, 6
    %s625 = sld [smem:[#allocation2 + $0xe]]
    %v626 = vstv %s625
    %v627 = vsel %vm624, %v626, %v623
    %vm628 = vcmp.eq.s32.totalorder %v64, 7
    %s629 = sld [smem:[#allocation2 + $0xf]]
    %v630 = vstv %s629
    %v631 = vsel %vm628, %v630, %v627
    %vm632 = vcmp.eq.s32.totalorder %v64, 8
    %s633 = sld [smem:[#allocation2 + $0x10]]
    %v634 = vstv %s633
    %v635 = vsel %vm632, %v634, %v631
    %vm636 = vcmp.eq.s32.totalorder %v64, 9
    %s637 = sld [smem:[#allocation2 + $0x11]]
    %v638 = vstv %s637
    %v639 = vsel %vm636, %v638, %v635
    %vm640 = vcmp.lt.s32.totalorder %v64, 10
    %v769 = vunpack.c.l.b16 %v472
    %v770 = vunpack.c.l.b16 %v473
    %v771 = vunpack.c.l.b16 %v474
    %v772 = vunpack.c.l.b16 %v475
    %v773 = vunpack.c.l.b16 %v476
    %v774 = vunpack.c.l.b16 %v477
    %v775 = vunpack.c.l.b16 %v478
    %v776 = vunpack.c.l.b16 %v479
    %v777 = vunpack.c.l.b16 %v480
    %v778 = vunpack.c.l.b16 %v481
    %v779 = vunpack.c.l.b16 %v482
    %v780 = vunpack.c.l.b16 %v483
    %v781 = vunpack.c.l.b16 %v484
    %v782 = vunpack.c.l.b16 %v485
    %v783 = vunpack.c.l.b16 %v486
    %v784 = vunpack.c.l.b16 %v487
    %v785 = vunpack.c.l.b16 %v488
    %v786 = vunpack.c.l.b16 %v489
    %v787 = vunpack.c.l.b16 %v490
    %v788 = vunpack.c.l.b16 %v491
    %v789 = vunpack.c.l.b16 %v492
    %v790 = vunpack.c.l.b16 %v493
    %v791 = vunpack.c.l.b16 %v494
    %v792 = vunpack.c.l.b16 %v495
    %v793 = vunpack.c.l.b16 %v496
    %v794 = vunpack.c.l.b16 %v497
    %v795 = vunpack.c.l.b16 %v498
    %v796 = vunpack.c.l.b16 %v499
    %v797 = vunpack.c.l.b16 %v500
    %v798 = vunpack.c.l.b16 %v501
    %v799 = vunpack.c.l.b16 %v502
    %v800 = vunpack.c.l.b16 %v503
    %v801 = vunpack.c.l.b16 %v504
    %v802 = vunpack.c.l.b16 %v505
    %v803 = vunpack.c.l.b16 %v506
    %v804 = vunpack.c.l.b16 %v507
    %v805 = vunpack.c.l.b16 %v508
    %v806 = vunpack.c.l.b16 %v509
    %v807 = vunpack.c.l.b16 %v510
    %v808 = vunpack.c.l.b16 %v511
    %v809 = vunpack.c.l.b16 %v512
    %v810 = vunpack.c.l.b16 %v513
    %v811 = vunpack.c.l.b16 %v514
    %v812 = vunpack.c.l.b16 %v515
    %v813 = vunpack.c.l.b16 %v516
    %v814 = vunpack.c.l.b16 %v517
    %v815 = vunpack.c.l.b16 %v518
    %v816 = vunpack.c.l.b16 %v519
    %v817 = vunpack.c.l.b16 %v520
    %v818 = vunpack.c.l.b16 %v521
    %v819 = vunpack.c.l.b16 %v522
    %v820 = vunpack.c.l.b16 %v523
    %v821 = vunpack.c.l.b16 %v524
    %v822 = vunpack.c.l.b16 %v525
    %v823 = vunpack.c.l.b16 %v526
    %v824 = vunpack.c.l.b16 %v527
    %v825 = vunpack.c.l.b16 %v528
    %v826 = vunpack.c.l.b16 %v529
    %v827 = vunpack.c.l.b16 %v530
    %v828 = vunpack.c.l.b16 %v531
    %v829 = vunpack.c.l.b16 %v532
    %v830 = vunpack.c.l.b16 %v533
    %v831 = vunpack.c.l.b16 %v534
    %v832 = vunpack.c.l.b16 %v535
    %v833 = vunpack.c.l.b16 %v536
    %v834 = vunpack.c.l.b16 %v537
    %v835 = vunpack.c.l.b16 %v538
    %v836 = vunpack.c.l.b16 %v539
    %v837 = vunpack.c.l.b16 %v540
    %v838 = vunpack.c.l.b16 %v541
    %v839 = vunpack.c.l.b16 %v542
    %v840 = vunpack.c.l.b16 %v543
    %v841 = vunpack.c.l.b16 %v544
    %v842 = vunpack.c.l.b16 %v545
    %v843 = vunpack.c.l.b16 %v546
    %v844 = vunpack.c.l.b16 %v547
    %v845 = vunpack.c.l.b16 %v548
    %v846 = vunpack.c.l.b16 %v549
    %v847 = vunpack.c.l.b16 %v550
    %v848 = vunpack.c.l.b16 %v551
    %v849 = vunpack.c.l.b16 %v552
    %v850 = vunpack.c.l.b16 %v553
    %v851 = vunpack.c.l.b16 %v554
    %v852 = vunpack.c.l.b16 %v555
    %v853 = vunpack.c.l.b16 %v556
    %v854 = vunpack.c.l.b16 %v557
    %v855 = vunpack.c.l.b16 %v558
    %v856 = vunpack.c.l.b16 %v559
    %v857 = vunpack.c.l.b16 %v560
    %v858 = vunpack.c.l.b16 %v561
    %v859 = vunpack.c.l.b16 %v562
    %v860 = vunpack.c.l.b16 %v563
    %v861 = vunpack.c.l.b16 %v564
    %v862 = vunpack.c.l.b16 %v565
    %v863 = vunpack.c.l.b16 %v566
    %v864 = vunpack.c.l.b16 %v567
    %v865 = vunpack.c.l.b16 %v568
    %v866 = vunpack.c.l.b16 %v569
    %v867 = vunpack.c.l.b16 %v570
    %v868 = vunpack.c.l.b16 %v571
    %v869 = vunpack.c.l.b16 %v572
    %v870 = vunpack.c.l.b16 %v573
    %v871 = vunpack.c.l.b16 %v574
    %v872 = vunpack.c.l.b16 %v575
    %v873 = vunpack.c.l.b16 %v576
    %v874 = vunpack.c.l.b16 %v577
    %v875 = vunpack.c.l.b16 %v578
    %v876 = vunpack.c.l.b16 %v579
    %v877 = vunpack.c.l.b16 %v580
    %v878 = vunpack.c.l.b16 %v581
    %v879 = vunpack.c.l.b16 %v582
    %v880 = vunpack.c.l.b16 %v583
    %v881 = vunpack.c.l.b16 %v584
    %v882 = vunpack.c.l.b16 %v585
    %v883 = vunpack.c.l.b16 %v586
    %v884 = vunpack.c.l.b16 %v587
    %v885 = vunpack.c.l.b16 %v588
    %v886 = vunpack.c.l.b16 %v589
    %v887 = vunpack.c.l.b16 %v590
    %v888 = vunpack.c.l.b16 %v591
    %v889 = vunpack.c.l.b16 %v592
    %v890 = vunpack.c.l.b16 %v593
    %v891 = vunpack.c.l.b16 %v594
    %v892 = vunpack.c.l.b16 %v595
    %v893 = vunpack.c.l.b16 %v596
    %v894 = vunpack.c.l.b16 %v597
    %v895 = vunpack.c.l.b16 %v598
    %v896 = vunpack.c.l.b16 %v599
    %v897 = vpack.c.b16 %v770, %v769
    %v898 = vpack.c.b16 %v772, %v771
    %v899 = vpack.c.b16 %v774, %v773
    %v900 = vpack.c.b16 %v776, %v775
    %v901 = vpack.c.b16 %v778, %v777
    %v902 = vpack.c.b16 %v780, %v779
    %v903 = vpack.c.b16 %v782, %v781
    %v904 = vpack.c.b16 %v784, %v783
    %v905 = vpack.c.b16 %v786, %v785
    %v906 = vpack.c.b16 %v788, %v787
    %v907 = vpack.c.b16 %v790, %v789
    %v908 = vpack.c.b16 %v792, %v791
    %v909 = vpack.c.b16 %v794, %v793
    %v910 = vpack.c.b16 %v796, %v795
    %v911 = vpack.c.b16 %v798, %v797
    %v912 = vpack.c.b16 %v800, %v799
    %v913 = vpack.c.b16 %v802, %v801
    %v914 = vpack.c.b16 %v804, %v803
    %v915 = vpack.c.b16 %v806, %v805
    %v916 = vpack.c.b16 %v808, %v807
    %v917 = vpack.c.b16 %v810, %v809
    %v918 = vpack.c.b16 %v812, %v811
    %v919 = vpack.c.b16 %v814, %v813
    %v920 = vpack.c.b16 %v816, %v815
    %v921 = vpack.c.b16 %v818, %v817
    %v922 = vpack.c.b16 %v820, %v819
    %v923 = vpack.c.b16 %v822, %v821
    %v924 = vpack.c.b16 %v824, %v823
    %v925 = vpack.c.b16 %v826, %v825
    %v926 = vpack.c.b16 %v828, %v827
    %v927 = vpack.c.b16 %v830, %v829
    %v928 = vpack.c.b16 %v832, %v831
    %v929 = vpack.c.b16 %v834, %v833
    %v930 = vpack.c.b16 %v836, %v835
    %v931 = vpack.c.b16 %v838, %v837
    %v932 = vpack.c.b16 %v840, %v839
    %v933 = vpack.c.b16 %v842, %v841
    %v934 = vpack.c.b16 %v844, %v843
    %v935 = vpack.c.b16 %v846, %v845
    %v936 = vpack.c.b16 %v848, %v847
    %v937 = vpack.c.b16 %v850, %v849
    %v938 = vpack.c.b16 %v852, %v851
    %v939 = vpack.c.b16 %v854, %v853
    %v940 = vpack.c.b16 %v856, %v855
    %v941 = vpack.c.b16 %v858, %v857
    %v942 = vpack.c.b16 %v860, %v859
    %v943 = vpack.c.b16 %v862, %v861
    %v944 = vpack.c.b16 %v864, %v863
    %v945 = vpack.c.b16 %v866, %v865
    %v946 = vpack.c.b16 %v868, %v867
    %v947 = vpack.c.b16 %v870, %v869
    %v948 = vpack.c.b16 %v872, %v871
    %v949 = vpack.c.b16 %v874, %v873
    %v950 = vpack.c.b16 %v876, %v875
    %v951 = vpack.c.b16 %v878, %v877
    %v952 = vpack.c.b16 %v880, %v879
    %v953 = vpack.c.b16 %v882, %v881
    %v954 = vpack.c.b16 %v884, %v883
    %v955 = vpack.c.b16 %v886, %v885
    %v956 = vpack.c.b16 %v888, %v887
    %v957 = vpack.c.b16 %v890, %v889
    %v958 = vpack.c.b16 %v892, %v891
    %v959 = vpack.c.b16 %v894, %v893
    %v960 = vpack.c.b16 %v896, %v895
    %1025 = vmatprep.subr.bf16.mxu0 0
    %1026 = vmatpush1.bf16.msra.mxu0 %v904
    %1027 = vmatprep.subr.bf16.mxu0 0
    %1028 = vmatpush1.bf16.msra.mxu0 %v903
    %1029 = vmatprep.subr.bf16.mxu0 0
    %1030 = vmatpush1.bf16.msra.mxu0 %v902
    %1031 = vmatprep.subr.bf16.mxu0 0
    %1032 = vmatpush1.bf16.msra.mxu0 %v901
    %1033 = vmatprep.subr.bf16.mxu0 0
    %1034 = vmatpush1.bf16.msra.mxu0 %v900
    %1035 = vmatprep.subr.bf16.mxu0 0
    %1036 = vmatpush1.bf16.msra.mxu0 %v899
    %1037 = vmatprep.subr.bf16.mxu0 0
    %1038 = vmatpush1.bf16.msra.mxu0 %v898
    %1039 = vmatprep.subr.bf16.mxu0 0
    %1040 = vmatpush1.bf16.msra.mxu0 %v897
    %1041 = vmatprep.subr.bf16.mxu0 0
    %1042 = vmatpush2.bf16.msra.mxu0 %v912
    %1043 = vmatprep.subr.bf16.mxu0 0
    %1044 = vmatpush2.bf16.msra.mxu0 %v911
    %1045 = vmatprep.subr.bf16.mxu0 0
    %1046 = vmatpush2.bf16.msra.mxu0 %v910
    %1047 = vmatprep.subr.bf16.mxu0 0
    %1048 = vmatpush2.bf16.msra.mxu0 %v909
    %1049 = vmatprep.subr.bf16.mxu0 0
    %1050 = vmatpush2.bf16.msra.mxu0 %v908
    %1051 = vmatprep.subr.bf16.mxu0 0
    %1052 = vmatpush2.bf16.msra.mxu0 %v907
    %1053 = vmatprep.subr.bf16.mxu0 0
    %1054 = vmatpush2.bf16.msra.mxu0 %v906
    %1055 = vmatprep.subr.bf16.mxu0 0
    %1056 = vmatpush2.bf16.msra.mxu0 %v905
    %1057 = vmatprep.mubr.bf16.mxu0 %v465
    %1058 = vmatmul.mubr.bf16.gmra.mxu0 %v464
    %v1059 = vpop.f32.mrf.mxu0
    %v1060 = vadd.f32 %v639, %v1059
    %v1061 = vpop.f32.mrf.mxu0
    %v1062 = vpop.f32.mrf.mxu0
    %v1063 = vadd.f32 %v639, %v1062
    %v1064 = vpop.f32.mrf.mxu0
    %1065 = vdwg.mxu0
    %1066 = vmatprep.subr.bf16.mxu0 0
    %1067 = vmatpush1.bf16.msra.mxu0 %v920
    %1068 = vmatprep.subr.bf16.mxu0 0
    %1069 = vmatpush1.bf16.msra.mxu0 %v919
    %1070 = vmatprep.subr.bf16.mxu0 0
    %1071 = vmatpush1.bf16.msra.mxu0 %v918
    %1072 = vmatprep.subr.bf16.mxu0 0
    %1073 = vmatpush1.bf16.msra.mxu0 %v917
    %1074 = vmatprep.subr.bf16.mxu0 0
    %1075 = vmatpush1.bf16.msra.mxu0 %v916
    %1076 = vmatprep.subr.bf16.mxu0 0
    %1077 = vmatpush1.bf16.msra.mxu0 %v915
    %1078 = vmatprep.subr.bf16.mxu0 0
    %1079 = vmatpush1.bf16.msra.mxu0 %v914
    %1080 = vmatprep.subr.bf16.mxu0 0
    %1081 = vmatpush1.bf16.msra.mxu0 %v913
    %1082 = vmatprep.subr.bf16.mxu0 0
    %1083 = vmatpush2.bf16.msra.mxu0 %v928
    %1084 = vmatprep.subr.bf16.mxu0 0
    %1085 = vmatpush2.bf16.msra.mxu0 %v927
    %1086 = vmatprep.subr.bf16.mxu0 0
    %1087 = vmatpush2.bf16.msra.mxu0 %v926
    %1088 = vmatprep.subr.bf16.mxu0 0
    %1089 = vmatpush2.bf16.msra.mxu0 %v925
    %1090 = vmatprep.subr.bf16.mxu0 0
    %1091 = vmatpush2.bf16.msra.mxu0 %v924
    %1092 = vmatprep.subr.bf16.mxu0 0
    %1093 = vmatpush2.bf16.msra.mxu0 %v923
    %1094 = vmatprep.subr.bf16.mxu0 0
    %1095 = vmatpush2.bf16.msra.mxu0 %v922
    %1096 = vmatprep.subr.bf16.mxu0 0
    %1097 = vmatpush2.bf16.msra.mxu0 %v921
    %1098 = vmatprep.mubr.bf16.mxu0 %v467
    %1099 = vmatmul.mubr.bf16.gmra.mxu0 %v466
    %v1100 = vpop.f32.mrf.mxu0
    %v1101 = vadd.f32 %v1060, %v1100
    %v1102 = vpop.f32.mrf.mxu0
    %v1103 = vpop.f32.mrf.mxu0
    %v1104 = vadd.f32 %v1063, %v1103
    %v1105 = vpop.f32.mrf.mxu0
    %1106 = vdwg.mxu0
    %1107 = vmatprep.subr.bf16.mxu0 0
    %1108 = vmatpush1.bf16.msra.mxu0 %v936
    %1109 = vmatprep.subr.bf16.mxu0 0
    %1110 = vmatpush1.bf16.msra.mxu0 %v935
    %1111 = vmatprep.subr.bf16.mxu0 0
    %1112 = vmatpush1.bf16.msra.mxu0 %v934
    %1113 = vmatprep.subr.bf16.mxu0 0
    %1114 = vmatpush1.bf16.msra.mxu0 %v933
    %1115 = vmatprep.subr.bf16.mxu0 0
    %1116 = vmatpush1.bf16.msra.mxu0 %v932
    %1117 = vmatprep.subr.bf16.mxu0 0
    %1118 = vmatpush1.bf16.msra.mxu0 %v931
    %1119 = vmatprep.subr.bf16.mxu0 0
    %1120 = vmatpush1.bf16.msra.mxu0 %v930
    %1121 = vmatprep.subr.bf16.mxu0 0
    %1122 = vmatpush1.bf16.msra.mxu0 %v929
    %1123 = vmatprep.subr.bf16.mxu0 0
    %1124 = vmatpush2.bf16.msra.mxu0 %v944
    %1125 = vmatprep.subr.bf16.mxu0 0
    %1126 = vmatpush2.bf16.msra.mxu0 %v943
    %1127 = vmatprep.subr.bf16.mxu0 0
    %1128 = vmatpush2.bf16.msra.mxu0 %v942
    %1129 = vmatprep.subr.bf16.mxu0 0
    %1130 = vmatpush2.bf16.msra.mxu0 %v941
    %1131 = vmatprep.subr.bf16.mxu0 0
    %1132 = vmatpush2.bf16.msra.mxu0 %v940
    %1133 = vmatprep.subr.bf16.mxu0 0
    %1134 = vmatpush2.bf16.msra.mxu0 %v939
    %1135 = vmatprep.subr.bf16.mxu0 0
    %1136 = vmatpush2.bf16.msra.mxu0 %v938
    %1137 = vmatprep.subr.bf16.mxu0 0
    %1138 = vmatpush2.bf16.msra.mxu0 %v937
    %1139 = vmatprep.mubr.bf16.mxu0 %v469
    %1140 = vmatmul.mubr.bf16.gmra.mxu0 %v468
    %v1141 = vpop.f32.mrf.mxu0
    %v1142 = vadd.f32 %v1101, %v1141
    %v1143 = vpop.f32.mrf.mxu0
    %v1144 = vpop.f32.mrf.mxu0
    %v1145 = vadd.f32 %v1104, %v1144
    %v1146 = vpop.f32.mrf.mxu0
    %1147 = vdwg.mxu0
    %1148 = vmatprep.subr.bf16.mxu0 0
    %1149 = vmatpush1.bf16.msra.mxu0 %v952
    %1150 = vmatprep.subr.bf16.mxu0 0
    %1151 = vmatpush1.bf16.msra.mxu0 %v951
    %1152 = vmatprep.subr.bf16.mxu0 0
    %1153 = vmatpush1.bf16.msra.mxu0 %v950
    %1154 = vmatprep.subr.bf16.mxu0 0
    %1155 = vmatpush1.bf16.msra.mxu0 %v949
    %1156 = vmatprep.subr.bf16.mxu0 0
    %1157 = vmatpush1.bf16.msra.mxu0 %v948
    %1158 = vmatprep.subr.bf16.mxu0 0
    %1159 = vmatpush1.bf16.msra.mxu0 %v947
    %1160 = vmatprep.subr.bf16.mxu0 0
    %1161 = vmatpush1.bf16.msra.mxu0 %v946
    %1162 = vmatprep.subr.bf16.mxu0 0
    %1163 = vmatpush1.bf16.msra.mxu0 %v945
    %1164 = vmatprep.subr.bf16.mxu0 0
    %1165 = vmatpush2.bf16.msra.mxu0 %v960
    %1166 = vmatprep.subr.bf16.mxu0 0
    %1167 = vmatpush2.bf16.msra.mxu0 %v959
    %1168 = vmatprep.subr.bf16.mxu0 0
    %1169 = vmatpush2.bf16.msra.mxu0 %v958
    %1170 = vmatprep.subr.bf16.mxu0 0
    %1171 = vmatpush2.bf16.msra.mxu0 %v957
    %1172 = vmatprep.subr.bf16.mxu0 0
    %1173 = vmatpush2.bf16.msra.mxu0 %v956
    %1174 = vmatprep.subr.bf16.mxu0 0
    %1175 = vmatpush2.bf16.msra.mxu0 %v955
    %1176 = vmatprep.subr.bf16.mxu0 0
    %1177 = vmatpush2.bf16.msra.mxu0 %v954
    %1178 = vmatprep.subr.bf16.mxu0 0
    %1179 = vmatpush2.bf16.msra.mxu0 %v953
    %1180 = vmatprep.mubr.bf16.mxu0 %v471
    %1181 = vmatmul.mubr.bf16.gmra.mxu0 %v470
    %v1182 = vpop.f32.mrf.mxu0
    %v1183 = vadd.f32 %v1142, %v1182
    %v1184 = vpop.f32.mrf.mxu0
    %v1185 = vpop.f32.mrf.mxu0
    %v1186 = vadd.f32 %v1145, %v1185
    %v1187 = vpop.f32.mrf.mxu0
    %1188 = vdwg.mxu0
    %v1189 = vsel %vm640, 1, 0
    %vm1190 = vcmp.eq.s32.totalorder %v1189, 1
    %v1191 = vsel %vm1190, %v1183, -inf
    %v1192 = vsel %vm1190, %v1186, -inf
    %1193 = vmax.xlane.f32.xlu0 %v1191
    %v1194 = vpop.xlane.xlu0 %1193
    %1195 = vmax.xlane.f32.xlu0 %v1192
    %v1196 = vpop.xlane.xlu0 %1195
    %v1197 = vsub.f32 %v1191, %v1194
    %v1198 = vsub.f32 %v1192, %v1196
    %v1199 = vmul.f32 %v1197, 1.442695
    %v1200 = vpow.pop %v1199
    %v1201 = vmul.f32 %v1198, 1.442695
    %v1202 = vpow.pop %v1201
    %1203 = vadd.xlane.f32.xlu0 %v1200
    %v1204 = vpop.xlane.xlu0 %1203
    %1205 = vadd.xlane.f32.xlu0 %v1202
    %v1206 = vpop.xlane.xlu0 %1205
    %v1207 = vrcp.pop %v1204
    %v1208 = vmul.f32 %v1200, %v1207
    %v1209 = vrcp.pop %v1206
    %v1210 = vmul.f32 %v1202, %v1209
    %1211 = vst [vmem:[%s3] sm:$0xff] %v1208
    %1212 = vst [vmem:[%s3 + $0x8] sm:$0xff] %v1210
    // Predicated region
    $region22: #{classif_layer_forward.1} parent=1 // pred_check
      _
    $region23: #{classif_layer_forward.1} parent=1 // pred_check_branch
      %1214 = sbr.rel (0) target = $region25
    $region24: #{classif_layer_forward.1} parent=1 // pred_region
      _
    $region25: #{classif_layer_forward.1} parent=1 // pred_fallthru
      _
    // Predicated region
    $region26: #{classif_layer_forward.1} parent=1 // pred_check
      _
    $region27: #{classif_layer_forward.1} parent=1 // pred_check_branch
      %1216 = sbr.rel (0) target = $region29
    $region28: #{classif_layer_forward.1} parent=1 // pred_region
      _
    $region29: #{classif_layer_forward.1} parent=1 // pred_fallthru
      _
    %1217 = vsyncpa [#allocation3], 1
    %1218 = vsyncpa [#allocation4], 1

</llo_original>
